<compile_context>
chip_gen: v6e
topology: v6e:2x2x1
jax: 0.10.0
libtpu: 0.0.40
codegen_flags: <defaults>
</compile_context>

<pallas_src>
import jax
import jax.numpy as jnp
from jax.experimental import pallas as pl
from jax.experimental.pallas import tpu as pltpu


def _hbm_copy_kernel(x_hbm, o_hbm, sem):
    # Single whole-array HBM->HBM DMA (no VMEM staging, one descriptor).
    cp = pltpu.make_async_copy(x_hbm, o_hbm, sem)
    cp.start()
    cp.wait()


def yolo_layer_forward(x: jax.Array,
                       anchors,
                       num_classes: int,
                       *,
                       materialize: bool = False) -> jax.Array:
    """Pallas implementation of YOLOLayer.forward (identity on NCHW input).

    Default: returns `x` directly (the optimal implementation — no HBM
    traffic).  `materialize=True` opts into a fresh output buffer produced by
    a single HBM->HBM DMA kernel.
    """
    # Mirror the (unused) shape introspection done by the torch module.
    batch_size, _, grid_size, _ = x.shape
    del batch_size, grid_size, anchors, num_classes  # unused by forward()

    if not materialize or x.size == 0:
        # Identity: the fastest legal implementation on every generation.
        return x

    nbytes = x.size * jnp.dtype(x.dtype).itemsize
    return pl.pallas_call(
        _hbm_copy_kernel,
        out_shape=jax.ShapeDtypeStruct(x.shape, x.dtype),
        in_specs=[pl.BlockSpec(memory_space=pl.ANY)],
        out_specs=pl.BlockSpec(memory_space=pl.ANY),
        scratch_shapes=[pltpu.SemaphoreType.DMA],
        # Pure HBM traffic: 1 full read + 1 full write, zero compute.
        cost_estimate=pl.CostEstimate(
            flops=0, transcendentals=0, bytes_accessed=2 * nbytes),
    )(x)


if __name__ == "__main__":
    # Deterministic synthetic setup consistent with a YOLO detection head:
    # anchors / num_classes define the channel count C = A * (num_classes + 5).
    anchors = [(10, 13), (16, 30), (33, 23)]
    num_classes = 3
    A = len(anchors)
    B, C, H, W = 2, A * (num_classes + 5), 16, 16  # (2, 24, 16, 16)

    key = jax.random.PRNGKey(0)
    x = jax.random.normal(key, (B, C, H, W), dtype=jnp.float32)

    # Default path: identity, no kernel launched (review's top recommendation).
    y0 = yolo_layer_forward(x, anchors, num_classes)
    assert y0 is x

    # Materialized path: single HBM->HBM DMA copy via Pallas.
    y = jax.block_until_ready(
        yolo_layer_forward(x, anchors, num_classes, materialize=True))
    assert y.shape == x.shape and y.dtype == x.dtype
    assert bool(jnp.array_equal(y, x)), "identity forward mismatch"

    print("KERNEL_OK")
</pallas_src>

<mosaic_0001>
module attributes {stable_mosaic.version = 11 : i64} {
  func.func @_hbm_copy_kernel(%arg0: memref<2x24x16x16xf32, #tpu.memory_space<any>>, %arg1: memref<2x24x16x16xf32, #tpu.memory_space<any>>, %arg2: memref<!tpu.dma_semaphore, #tpu.memory_space<semaphore_mem>>) attributes {dimension_semantics = [], scalar_prefetch = 0 : i64, scratch_operands = 1 : i64, tpu.core_type = #tpu.core_type<tc>} {
    tpu.enqueue_dma source(%arg0 : memref<2x24x16x16xf32, #tpu.memory_space<any>>) target(%arg1 : memref<2x24x16x16xf32, #tpu.memory_space<any>>) target_semaphore(%arg2 : memref<!tpu.dma_semaphore, #tpu.memory_space<semaphore_mem>>)
    tpu.wait_dma2 semaphore(%arg2 : memref<!tpu.dma_semaphore, #tpu.memory_space<semaphore_mem>>) src(%arg0 : memref<2x24x16x16xf32, #tpu.memory_space<any>>) dst(%arg1 : memref<2x24x16x16xf32, #tpu.memory_space<any>>)
    return
  }
}

</mosaic_0001>

<llo_original>
// kernel: tpu_custom_call.1
$region0: #{tpu_custom_call.1}
  #allocation0 [shape = 'u32[]', space=smem, size = 0x4, offset = 0x4, fixed_abs, tag = 'smem constant byte address 0x4 - core index']
  #allocation1 [shape = 'u32[144,128]{1,0:T(1,128)}', space=vmem, size = 0x12000, scoped, tag = 'internal scratch']
  #allocation2 [shape = 's32[1]{0}', space=sflag, size = 0x4, scoped, tag = 'scratch operand']
  #allocation3 [shape = 's32[]', space=sflag, size = 0x4, offset = 0, fixed_abs, tag = 'sflag constant byte address 0x0 - dummy sync flag']
  %s0 = inlined_call_operand.vmem [shape: f32[2,24,16,16], index: 0, kind: input, shape index: {}]
  %s1 = inlined_call_operand.vmem [shape: f32[2,24,16,16], index: 1, kind: output, shape index: {}]
  %s2 = sld [smem:[#allocation0]]
  $region36: #{tpu_custom_call.1} parent=0
    _
  %s4 = ssub.s32 1, %s2
  %s5 = scalar_select 0, %s4, %s2
  %p7 = scmp.lt.u32.totalorder 768, 8
  %p8 = pneg %p7
  // Predicated region
  $region2: #{tpu_custom_call.1} parent=0 // pred_check
    _
  $region3: #{tpu_custom_call.1} parent=0 // pred_check_branch
    %10 = sbr.rel (%p7) target = $region5
  $region4: #{tpu_custom_call.1} parent=0 // pred_region
    %s26 = sand.u32 768, 7
    %p27 = scmp.eq.s32.totalorder %s26, 0
    // Predicated region
    $region17: #{tpu_custom_call.1} parent=4 // pred_check
      %p28 = pneg %p27
    $region18: #{tpu_custom_call.1} parent=4 // pred_check_branch
      %30 = sbr.rel (%p28) target = $region20
    $region19: #{tpu_custom_call.1} parent=4 // pred_region
      loop: start=0, step=1, limit=1
      $region21: #{tpu_custom_call.1} parent=19 // loop_pre_header
        _
      $region22: #{tpu_custom_call.1} parent=19 // loop_header
        %s32 = sphi 0, %s36
        %p33 = scmp.ge.s32.totalorder %s32, 1
        %s37 = sphi %s0, %s0
        %s38 = sphi %s1, %s1
      $region23: #{tpu_custom_call.1} parent=19 // loop_header_branch
        %35 = sbr.rel (%p33) target = $region27
      $region24: #{tpu_custom_call.1} parent=19 // loop_body
        %v39 = vld [vmem:[%s37] sm:$0xff]
        %40 = vst [vmem:[%s38] sm:$0xff] %v39
        %v41 = vld [vmem:[%s37 + $0x8] sm:$0xff]
        %42 = vst [vmem:[%s38 + $0x8] sm:$0xff] %v41
        %v43 = vld [vmem:[%s37 + $0x10] sm:$0xff]
        %44 = vst [vmem:[%s38 + $0x10] sm:$0xff] %v43
        %v45 = vld [vmem:[%s37 + $0x18] sm:$0xff]
        %46 = vst [vmem:[%s38 + $0x18] sm:$0xff] %v45
        %v47 = vld [vmem:[%s37 + $0x20] sm:$0xff]
        %48 = vst [vmem:[%s38 + $0x20] sm:$0xff] %v47
        %v49 = vld [vmem:[%s37 + $0x28] sm:$0xff]
        %50 = vst [vmem:[%s38 + $0x28] sm:$0xff] %v49
        %v51 = vld [vmem:[%s37 + $0x30] sm:$0xff]
        %52 = vst [vmem:[%s38 + $0x30] sm:$0xff] %v51
        %v53 = vld [vmem:[%s37 + $0x38] sm:$0xff]
        %54 = vst [vmem:[%s38 + $0x38] sm:$0xff] %v53
        %v55 = vld [vmem:[%s37 + $0x40] sm:$0xff]
        %56 = vst [vmem:[%s38 + $0x40] sm:$0xff] %v55
        %v57 = vld [vmem:[%s37 + $0x48] sm:$0xff]
        %58 = vst [vmem:[%s38 + $0x48] sm:$0xff] %v57
        %v59 = vld [vmem:[%s37 + $0x50] sm:$0xff]
        %60 = vst [vmem:[%s38 + $0x50] sm:$0xff] %v59
        %v61 = vld [vmem:[%s37 + $0x58] sm:$0xff]
        %62 = vst [vmem:[%s38 + $0x58] sm:$0xff] %v61
        %v63 = vld [vmem:[%s37 + $0x60] sm:$0xff]
        %64 = vst [vmem:[%s38 + $0x60] sm:$0xff] %v63
        %v65 = vld [vmem:[%s37 + $0x68] sm:$0xff]
        %66 = vst [vmem:[%s38 + $0x68] sm:$0xff] %v65
        %v67 = vld [vmem:[%s37 + $0x70] sm:$0xff]
        %68 = vst [vmem:[%s38 + $0x70] sm:$0xff] %v67
        %v69 = vld [vmem:[%s37 + $0x78] sm:$0xff]
        %70 = vst [vmem:[%s38 + $0x78] sm:$0xff] %v69
        %v71 = vld [vmem:[%s37 + $0x80] sm:$0xff]
        %72 = vst [vmem:[%s38 + $0x80] sm:$0xff] %v71
        %v73 = vld [vmem:[%s37 + $0x88] sm:$0xff]
        %74 = vst [vmem:[%s38 + $0x88] sm:$0xff] %v73
        %v75 = vld [vmem:[%s37 + $0x90] sm:$0xff]
        %76 = vst [vmem:[%s38 + $0x90] sm:$0xff] %v75
        %v77 = vld [vmem:[%s37 + $0x98] sm:$0xff]
        %78 = vst [vmem:[%s38 + $0x98] sm:$0xff] %v77
        %v79 = vld [vmem:[%s37 + $0xa0] sm:$0xff]
        %80 = vst [vmem:[%s38 + $0xa0] sm:$0xff] %v79
        %v81 = vld [vmem:[%s37 + $0xa8] sm:$0xff]
        %82 = vst [vmem:[%s38 + $0xa8] sm:$0xff] %v81
        %v83 = vld [vmem:[%s37 + $0xb0] sm:$0xff]
        %84 = vst [vmem:[%s38 + $0xb0] sm:$0xff] %v83
        %v85 = vld [vmem:[%s37 + $0xb8] sm:$0xff]
        %86 = vst [vmem:[%s38 + $0xb8] sm:$0xff] %v85
        %v87 = vld [vmem:[%s37 + $0xc0] sm:$0xff]
        %88 = vst [vmem:[%s38 + $0xc0] sm:$0xff] %v87
        %v89 = vld [vmem:[%s37 + $0xc8] sm:$0xff]
        %90 = vst [vmem:[%s38 + $0xc8] sm:$0xff] %v89
        %v91 = vld [vmem:[%s37 + $0xd0] sm:$0xff]
        %92 = vst [vmem:[%s38 + $0xd0] sm:$0xff] %v91
        %v93 = vld [vmem:[%s37 + $0xd8] sm:$0xff]
        %94 = vst [vmem:[%s38 + $0xd8] sm:$0xff] %v93
        %v95 = vld [vmem:[%s37 + $0xe0] sm:$0xff]
        %96 = vst [vmem:[%s38 + $0xe0] sm:$0xff] %v95
        %v97 = vld [vmem:[%s37 + $0xe8] sm:$0xff]
        %98 = vst [vmem:[%s38 + $0xe8] sm:$0xff] %v97
        %v99 = vld [vmem:[%s37 + $0xf0] sm:$0xff]
        %100 = vst [vmem:[%s38 + $0xf0] sm:$0xff] %v99
        %v101 = vld [vmem:[%s37 + $0xf8] sm:$0xff]
        %102 = vst [vmem:[%s38 + $0xf8] sm:$0xff] %v101
        %v103 = vld [vmem:[%s37 + $0x100] sm:$0xff]
        %104 = vst [vmem:[%s38 + $0x100] sm:$0xff] %v103
        %v105 = vld [vmem:[%s37 + $0x108] sm:$0xff]
        %106 = vst [vmem:[%s38 + $0x108] sm:$0xff] %v105
        %v107 = vld [vmem:[%s37 + $0x110] sm:$0xff]
        %108 = vst [vmem:[%s38 + $0x110] sm:$0xff] %v107
        %v109 = vld [vmem:[%s37 + $0x118] sm:$0xff]
        %110 = vst [vmem:[%s38 + $0x118] sm:$0xff] %v109
        %v111 = vld [vmem:[%s37 + $0x120] sm:$0xff]
        %112 = vst [vmem:[%s38 + $0x120] sm:$0xff] %v111
        %v113 = vld [vmem:[%s37 + $0x128] sm:$0xff]
        %114 = vst [vmem:[%s38 + $0x128] sm:$0xff] %v113
        %v115 = vld [vmem:[%s37 + $0x130] sm:$0xff]
        %116 = vst [vmem:[%s38 + $0x130] sm:$0xff] %v115
        %v117 = vld [vmem:[%s37 + $0x138] sm:$0xff]
        %118 = vst [vmem:[%s38 + $0x138] sm:$0xff] %v117
        %v119 = vld [vmem:[%s37 + $0x140] sm:$0xff]
        %120 = vst [vmem:[%s38 + $0x140] sm:$0xff] %v119
        %v121 = vld [vmem:[%s37 + $0x148] sm:$0xff]
        %122 = vst [vmem:[%s38 + $0x148] sm:$0xff] %v121
        %v123 = vld [vmem:[%s37 + $0x150] sm:$0xff]
        %124 = vst [vmem:[%s38 + $0x150] sm:$0xff] %v123
        %v125 = vld [vmem:[%s37 + $0x158] sm:$0xff]
        %126 = vst [vmem:[%s38 + $0x158] sm:$0xff] %v125
        %v127 = vld [vmem:[%s37 + $0x160] sm:$0xff]
        %128 = vst [vmem:[%s38 + $0x160] sm:$0xff] %v127
        %v129 = vld [vmem:[%s37 + $0x168] sm:$0xff]
        %130 = vst [vmem:[%s38 + $0x168] sm:$0xff] %v129
        %v131 = vld [vmem:[%s37 + $0x170] sm:$0xff]
        %132 = vst [vmem:[%s38 + $0x170] sm:$0xff] %v131
        %v133 = vld [vmem:[%s37 + $0x178] sm:$0xff]
        %134 = vst [vmem:[%s38 + $0x178] sm:$0xff] %v133
        %v135 = vld [vmem:[%s37 + $0x180] sm:$0xff]
        %136 = vst [vmem:[%s38 + $0x180] sm:$0xff] %v135
        %v137 = vld [vmem:[%s37 + $0x188] sm:$0xff]
        %138 = vst [vmem:[%s38 + $0x188] sm:$0xff] %v137
        %v139 = vld [vmem:[%s37 + $0x190] sm:$0xff]
        %140 = vst [vmem:[%s38 + $0x190] sm:$0xff] %v139
        %v141 = vld [vmem:[%s37 + $0x198] sm:$0xff]
        %142 = vst [vmem:[%s38 + $0x198] sm:$0xff] %v141
        %v143 = vld [vmem:[%s37 + $0x1a0] sm:$0xff]
        %144 = vst [vmem:[%s38 + $0x1a0] sm:$0xff] %v143
        %v145 = vld [vmem:[%s37 + $0x1a8] sm:$0xff]
        %146 = vst [vmem:[%s38 + $0x1a8] sm:$0xff] %v145
        %v147 = vld [vmem:[%s37 + $0x1b0] sm:$0xff]
        %148 = vst [vmem:[%s38 + $0x1b0] sm:$0xff] %v147
        %v149 = vld [vmem:[%s37 + $0x1b8] sm:$0xff]
        %150 = vst [vmem:[%s38 + $0x1b8] sm:$0xff] %v149
        %v151 = vld [vmem:[%s37 + $0x1c0] sm:$0xff]
        %152 = vst [vmem:[%s38 + $0x1c0] sm:$0xff] %v151
        %v153 = vld [vmem:[%s37 + $0x1c8] sm:$0xff]
        %154 = vst [vmem:[%s38 + $0x1c8] sm:$0xff] %v153
        %v155 = vld [vmem:[%s37 + $0x1d0] sm:$0xff]
        %156 = vst [vmem:[%s38 + $0x1d0] sm:$0xff] %v155
        %v157 = vld [vmem:[%s37 + $0x1d8] sm:$0xff]
        %158 = vst [vmem:[%s38 + $0x1d8] sm:$0xff] %v157
        %v159 = vld [vmem:[%s37 + $0x1e0] sm:$0xff]
        %160 = vst [vmem:[%s38 + $0x1e0] sm:$0xff] %v159
        %v161 = vld [vmem:[%s37 + $0x1e8] sm:$0xff]
        %162 = vst [vmem:[%s38 + $0x1e8] sm:$0xff] %v161
        %v163 = vld [vmem:[%s37 + $0x1f0] sm:$0xff]
        %164 = vst [vmem:[%s38 + $0x1f0] sm:$0xff] %v163
        %v165 = vld [vmem:[%s37 + $0x1f8] sm:$0xff]
        %166 = vst [vmem:[%s38 + $0x1f8] sm:$0xff] %v165
        %v167 = vld [vmem:[%s37 + $0x200] sm:$0xff]
        %168 = vst [vmem:[%s38 + $0x200] sm:$0xff] %v167
        %v169 = vld [vmem:[%s37 + $0x208] sm:$0xff]
        %170 = vst [vmem:[%s38 + $0x208] sm:$0xff] %v169
        %v171 = vld [vmem:[%s37 + $0x210] sm:$0xff]
        %172 = vst [vmem:[%s38 + $0x210] sm:$0xff] %v171
        %v173 = vld [vmem:[%s37 + $0x218] sm:$0xff]
        %174 = vst [vmem:[%s38 + $0x218] sm:$0xff] %v173
        %v175 = vld [vmem:[%s37 + $0x220] sm:$0xff]
        %176 = vst [vmem:[%s38 + $0x220] sm:$0xff] %v175
        %v177 = vld [vmem:[%s37 + $0x228] sm:$0xff]
        %178 = vst [vmem:[%s38 + $0x228] sm:$0xff] %v177
        %v179 = vld [vmem:[%s37 + $0x230] sm:$0xff]
        %180 = vst [vmem:[%s38 + $0x230] sm:$0xff] %v179
        %v181 = vld [vmem:[%s37 + $0x238] sm:$0xff]
        %182 = vst [vmem:[%s38 + $0x238] sm:$0xff] %v181
        %v183 = vld [vmem:[%s37 + $0x240] sm:$0xff]
        %184 = vst [vmem:[%s38 + $0x240] sm:$0xff] %v183
        %v185 = vld [vmem:[%s37 + $0x248] sm:$0xff]
        %186 = vst [vmem:[%s38 + $0x248] sm:$0xff] %v185
        %v187 = vld [vmem:[%s37 + $0x250] sm:$0xff]
        %188 = vst [vmem:[%s38 + $0x250] sm:$0xff] %v187
        %v189 = vld [vmem:[%s37 + $0x258] sm:$0xff]
        %190 = vst [vmem:[%s38 + $0x258] sm:$0xff] %v189
        %v191 = vld [vmem:[%s37 + $0x260] sm:$0xff]
        %192 = vst [vmem:[%s38 + $0x260] sm:$0xff] %v191
        %v193 = vld [vmem:[%s37 + $0x268] sm:$0xff]
        %194 = vst [vmem:[%s38 + $0x268] sm:$0xff] %v193
        %v195 = vld [vmem:[%s37 + $0x270] sm:$0xff]
        %196 = vst [vmem:[%s38 + $0x270] sm:$0xff] %v195
        %v197 = vld [vmem:[%s37 + $0x278] sm:$0xff]
        %198 = vst [vmem:[%s38 + $0x278] sm:$0xff] %v197
        %v199 = vld [vmem:[%s37 + $0x280] sm:$0xff]
        %200 = vst [vmem:[%s38 + $0x280] sm:$0xff] %v199
        %v201 = vld [vmem:[%s37 + $0x288] sm:$0xff]
        %202 = vst [vmem:[%s38 + $0x288] sm:$0xff] %v201
        %v203 = vld [vmem:[%s37 + $0x290] sm:$0xff]
        %204 = vst [vmem:[%s38 + $0x290] sm:$0xff] %v203
        %v205 = vld [vmem:[%s37 + $0x298] sm:$0xff]
        %206 = vst [vmem:[%s38 + $0x298] sm:$0xff] %v205
        %v207 = vld [vmem:[%s37 + $0x2a0] sm:$0xff]
        %208 = vst [vmem:[%s38 + $0x2a0] sm:$0xff] %v207
        %v209 = vld [vmem:[%s37 + $0x2a8] sm:$0xff]
        %210 = vst [vmem:[%s38 + $0x2a8] sm:$0xff] %v209
        %v211 = vld [vmem:[%s37 + $0x2b0] sm:$0xff]
        %212 = vst [vmem:[%s38 + $0x2b0] sm:$0xff] %v211
        %v213 = vld [vmem:[%s37 + $0x2b8] sm:$0xff]
        %214 = vst [vmem:[%s38 + $0x2b8] sm:$0xff] %v213
        %v215 = vld [vmem:[%s37 + $0x2c0] sm:$0xff]
        %216 = vst [vmem:[%s38 + $0x2c0] sm:$0xff] %v215
        %v217 = vld [vmem:[%s37 + $0x2c8] sm:$0xff]
        %218 = vst [vmem:[%s38 + $0x2c8] sm:$0xff] %v217
        %v219 = vld [vmem:[%s37 + $0x2d0] sm:$0xff]
        %220 = vst [vmem:[%s38 + $0x2d0] sm:$0xff] %v219
        %v221 = vld [vmem:[%s37 + $0x2d8] sm:$0xff]
        %222 = vst [vmem:[%s38 + $0x2d8] sm:$0xff] %v221
        %v223 = vld [vmem:[%s37 + $0x2e0] sm:$0xff]
        %224 = vst [vmem:[%s38 + $0x2e0] sm:$0xff] %v223
        %v225 = vld [vmem:[%s37 + $0x2e8] sm:$0xff]
        %226 = vst [vmem:[%s38 + $0x2e8] sm:$0xff] %v225
        %v227 = vld [vmem:[%s37 + $0x2f0] sm:$0xff]
        %228 = vst [vmem:[%s38 + $0x2f0] sm:$0xff] %v227
        %v229 = vld [vmem:[%s37 + $0x2f8] sm:$0xff]
        %230 = vst [vmem:[%s38 + $0x2f8] sm:$0xff] %v229
      $region25: #{tpu_custom_call.1} parent=19 // loop_footer
        %s36 = sadd.s32 1, %s32
      $region26: #{tpu_custom_call.1} parent=19 // loop_footer_branch
        %31 = sbr.rel target = $region22
      $region27: #{tpu_custom_call.1} parent=19 // loop_exit
        _
    $region20: #{tpu_custom_call.1} parent=4 // pred_fallthru
      _
    %p231 = pneg %p27
    // Predicated region
    $region28: #{tpu_custom_call.1} parent=4 // pred_check
      _
    $region29: #{tpu_custom_call.1} parent=4 // pred_check_branch
      %233 = sbr.rel (%p27) target = $region31
    $region30: #{tpu_custom_call.1} parent=4 // pred_region
      %s234 = sand.u32 768, 7
    $region31: #{tpu_custom_call.1} parent=4 // pred_fallthru
      _
  $region5: #{tpu_custom_call.1} parent=0 // pred_fallthru
    _
  // Predicated region
  $region6: #{tpu_custom_call.1} parent=0 // pred_check
    %p11 = pneg %p7
  $region7: #{tpu_custom_call.1} parent=0 // pred_check_branch
    %13 = sbr.rel (%p11) target = $region9
  $region8: #{tpu_custom_call.1} parent=0 // pred_region
    %s14 = sshll.u32 1, 768
    %s15 = ssub.s32 %s14, 1
    loop: start=0, step=1, limit=1
    $region10: #{tpu_custom_call.1} parent=8 // loop_pre_header
      _
    $region11: #{tpu_custom_call.1} parent=8 // loop_header
      %s17 = sphi 0, %s21
      %p18 = scmp.ge.s32.totalorder %s17, 1
      %s22 = sphi %s0, %s0
      %s23 = sphi %s1, %s1
    $region12: #{tpu_custom_call.1} parent=8 // loop_header_branch
      %20 = sbr.rel (%p18) target = $region16
    $region13: #{tpu_custom_call.1} parent=8 // loop_body
      %v24 = vld [vmem:[%s22] sm:%s15]
      %25 = vst [vmem:[%s23] sm:%s15] %v24
    $region14: #{tpu_custom_call.1} parent=8 // loop_footer
      %s21 = sadd.s32 1, %s17
    $region15: #{tpu_custom_call.1} parent=8 // loop_footer_branch
      %16 = sbr.rel target = $region11
    $region16: #{tpu_custom_call.1} parent=8 // loop_exit
      _
  $region9: #{tpu_custom_call.1} parent=0 // pred_fallthru
    _
  // Predicated region
  $region32: #{tpu_custom_call.1} parent=0 // pred_check
    _
  $region33: #{tpu_custom_call.1} parent=0 // pred_check_branch
    %237 = sbr.rel (0) target = $region35
  $region34: #{tpu_custom_call.1} parent=0 // pred_region
    %238 = vsyncadd [#allocation2], 12288
  $region35: #{tpu_custom_call.1} parent=0 // pred_fallthru
    _
  %s239 = smul.u32 2, 24
  %s240 = smul.u32 %s239, 16
  %s241 = smul.u32 %s240, 1
  %s242 = sshll.u32 %s241, 4
  %243 = dma.done [#allocation2], %s242
  %244 = vsyncmov [#allocation2]
  %s245 = vpop.sfrf %244
  %p246 = scmp.eq.s32.totalorder %s245, 0
  %p247 = pneg %p246
  %249 = shalt.err (%p247)

</llo_original>
